<compile_context>
chip_gen: v7x
topology: tpu7x:2x2x1
jax: 0.10.0
libtpu: 0.0.40
codegen_flags: <defaults>
</compile_context>

<pallas_src>
import functools

import jax
import jax.numpy as jnp
from jax import lax
from jax.experimental import pallas as pl
from jax.experimental.pallas import tpu as pltpu

VREG_ROWS = 8          # f32 sublane rows per vreg
VREG_LANES = 128       # lanes per vreg
MAX_BLOCK_VREGS = 8    # block = 8 rows x (128*bv) lanes -> <= 8 vregs (32 KiB)
TARGET_GRID = 8        # aim for >= 8 grid steps (keeps both v7x TCs busy)
CHECK_EVERY = 8        # Newton steps per unrolled chunk; MUST be even so that
                       # 1-ulp period-2 f32 limit cycles cancel over a chunk

_LN2 = 0.6931471805599453
_LOG2_BIAS = 126.94269504   # classic fast-log2 exponent-field constant


def _phi_inv_kernel(y_ref, t_ref, done_ref, *, a, max_iter, check_every):
    """Elementwise Newton root of phi(t) = exp(-a*t) = y, in s = a*t space."""
    a = float(a)
    inv_a = 1.0 / a

    y = y_ref[...]                       # (8, lane) f32; stays vreg-resident

    # Warm start: s0 ~= -ln(y) from the exponent field (pure VPU, no EUP).
    # |s0 - (-ln y)| <= ~0.03, so Newton is in its quadratic phase immediately.
    bits = pltpu.bitcast(y, jnp.int32)
    s0 = (_LOG2_BIAS - bits.astype(jnp.float32) * (1.0 / (1 << 23))) * _LN2

    # Two-entry SMEM flag: [0] = lagged flag used for branching, [1] = latest.
    # Lagging by one chunk hides the reduce->scalar->SMEM->branch latency
    # behind a full chunk of EUP work.
    done_ref[0] = jnp.int32(0)
    done_ref[1] = jnp.int32(0)

    def run_chunk(s_in, n_steps):
        def newton_step(_, s):
            # Newton on exp(-s) = y:  s <- s + 1 - y*exp(s)  (== t-space step * a)
            return (s + 1.0) - y * jnp.exp(s)
        s_out = lax.fori_loop(0, n_steps, newton_step, s_in, unroll=True)
        # Single XLU reduce per chunk.  delta == 0  <=>  s_in is an exact f32
        # fixed point of the whole (even-length) chunk, so all remaining full
        # chunks provably change nothing -- exiting is exactly equivalent to
        # running max_iter out.  (The PyTorch |phi(t)-y| < 1e-10 break can never
        # fire in f32, so it is intentionally not reproduced.)
        delta = jnp.max(jnp.abs(s_out - s_in))
        return s_out, delta

    # Newton state (s-space) lives in the output block between chunks and in
    # vregs inside a chunk; converted to t once at the end.
    t_ref[...] = s0

    num_chunks = max_iter // check_every
    rem = max_iter % check_every

    if num_chunks > 0:
        @pl.loop(0, num_chunks)
        def _(_k):
            @pl.when(done_ref[0] == 0)
            def _():
                # Promote the lagged flag *before* the chunk: the branch for the
                # next chunk then only waits on this cheap scalar copy, while the
                # XLU reduce below only gates the branch two chunks out.
                done_ref[0] = done_ref[1]
                s_out, delta = run_chunk(t_ref[...], check_every)
                t_ref[...] = s_out
                done_ref[1] = (delta <= 0.0).astype(jnp.int32)

    if rem > 0:
        # Remainder tail (max_iter not a multiple of check_every).  Run it
        # unconditionally: if the iterate is already a chunk fixed point these
        # few steps keep the endpoint identical to running the full max_iter.
        s_out, _ = run_chunk(t_ref[...], rem)
        t_ref[...] = s_out

    # s = a*t  ->  t
    t_ref[...] = t_ref[...] * inv_a


def phi_inv(y, a, *, max_iter=400, tol=1e-10):
    """Pallas-backed PhiInv.forward: t with phi(t) ~= y, same shape/dtype as y.

    `tol` is accepted for API parity but unused: 1e-10 is below f32 resolution
    so the tol-based break could never fire; the kernel instead exits once
    further iterations provably cannot change the f32 iterate.
    """
    del tol
    orig_shape = y.shape
    orig_dtype = y.dtype
    n = int(y.size)

    # Layout: lane-dense (rows, lane) slab of 8-row blocks, each <= 8 vregs so
    # the Newton state stays vreg-resident, with the lane width adapted so the
    # grid has ~TARGET_GRID+ steps when the problem is big enough.
    n_vregs = max(pl.cdiv(n, VREG_ROWS * VREG_LANES), 1)
    block_vregs = min(MAX_BLOCK_VREGS, max(n_vregs // TARGET_GRID, 1))
    lane = VREG_LANES * block_vregs
    block_rows = VREG_ROWS
    num_blocks = pl.cdiv(n, block_rows * lane)
    rows = num_blocks * block_rows
    n_pad = rows * lane

    # Pad with 1.0: phi(0) = 1, so padded entries converge essentially
    # immediately and never delay the block-level early exit.
    flat = jnp.ravel(y).astype(jnp.float32)
    flat = jnp.pad(flat, (0, n_pad - n), constant_values=1.0)
    y2d = flat.reshape(rows, lane)

    kernel = functools.partial(
        _phi_inv_kernel, a=float(a), max_iter=int(max_iter),
        check_every=CHECK_EVERY)

    out2d = pl.pallas_call(
        kernel,
        out_shape=jax.ShapeDtypeStruct((rows, lane), jnp.float32),
        grid_spec=pltpu.PrefetchScalarGridSpec(
            num_scalar_prefetch=0,
            grid=(num_blocks,),
            in_specs=[pl.BlockSpec((block_rows, lane), lambda i: (i, 0))],
            out_specs=pl.BlockSpec((block_rows, lane), lambda i: (i, 0)),
            scratch_shapes=[pltpu.SMEM((2,), jnp.int32)],  # lagged "done" flags
        ),
        compiler_params=pltpu.CompilerParams(
            dimension_semantics=("parallel",),   # shards blocks across v7x TCs
        ),
    )(y2d)

    return out2d.reshape(-1)[:n].reshape(orig_shape).astype(orig_dtype)


# TODO(synk): FastInverse.backward (implicit-function-theorem gradients w.r.t. y
# and phi's parameters) and the `guarded` Newton path are autograd/fallback
# machinery with no forward-pass equivalent; only the forward root is implemented.

if __name__ == "__main__":
    key = jax.random.PRNGKey(0)

    # Deterministic generator parameter (the "weights" of phi).
    a = 1.3

    # y must lie in the range of phi(t) = exp(-a*t); sample in (0.05, 0.95).
    B, C, H, W = 2, 4, 16, 16
    y = jax.random.uniform(key, (B, C, H, W), dtype=jnp.float32,
                           minval=0.05, maxval=0.95)

    t = phi_inv(y, a, max_iter=400, tol=1e-10)
    t = jax.block_until_ready(t)

    # Reference: closed-form inverse of phi(t) = exp(-a*t) is t = -ln(y)/a.
    t_ref = -jnp.log(y) / a
    assert t.shape == y.shape and t.dtype == y.dtype
    err = float(jnp.max(jnp.abs(jnp.exp(-a * t) - y)))
    ref_err = float(jnp.max(jnp.abs(t - t_ref)))
    assert err < 1e-5, f"phi(t) != y, max residual {err}"
    assert ref_err < 1e-4, f"Newton root deviates from closed form by {ref_err}"

    print("KERNEL_OK")
</pallas_src>

<mosaic_0001>
module attributes {stable_mosaic.version = 11 : i64} {
  func.func @_phi_inv_kernel(%arg0: i32, %arg1: memref<8x128xf32, #tpu.memory_space<vmem>>, %arg2: memref<8x128xf32, #tpu.memory_space<vmem>>, %arg3: memref<2xi32, #tpu.memory_space<smem>>) attributes {dimension_semantics = [#tpu.dimension_semantics<parallel>], iteration_bounds = array<i64: 2>, scalar_prefetch = 0 : i64, scratch_operands = 1 : i64, tpu.core_type = #tpu.core_type<tc>, window_params = [{transform_indices = @transform_0, window_bounds = array<i64: 8, 128>}, {transform_indices = @transform_1, window_bounds = array<i64: 8, 128>}]} {
    %c0 = arith.constant 0 : index
    %c0_0 = arith.constant 0 : index
    %0 = vector.load %arg1[%c0, %c0_0] : memref<8x128xf32, #tpu.memory_space<vmem>>, vector<8x128xf32>
    %1 = tpu.bitcast %0 : vector<8x128xf32> -> vector<8x128xi32>
    %2 = arith.sitofp %1 : vector<8x128xi32> to vector<8x128xf32>
    %cst = arith.constant 1.1920929E-7 : f32
    %3 = vector.broadcast %cst : f32 to vector<8x128xf32>
    %4 = arith.mulf %2, %3 : vector<8x128xf32>
    %cst_1 = arith.constant 126.942696 : f32
    %5 = vector.broadcast %cst_1 : f32 to vector<8x128xf32>
    %6 = arith.subf %5, %4 : vector<8x128xf32>
    %cst_2 = arith.constant 0.693147182 : f32
    %7 = vector.broadcast %cst_2 : f32 to vector<8x128xf32>
    %8 = arith.mulf %6, %7 : vector<8x128xf32>
    %c0_i32 = arith.constant 0 : i32
    %c0_3 = arith.constant 0 : index
    %9 = memref.load %arg3[%c0_3] : memref<2xi32, #tpu.memory_space<smem>>
    memref.store %c0_i32, %arg3[%c0_3] : memref<2xi32, #tpu.memory_space<smem>>
    %c0_i32_4 = arith.constant 0 : i32
    %c1 = arith.constant 1 : index
    %10 = memref.load %arg3[%c1] : memref<2xi32, #tpu.memory_space<smem>>
    memref.store %c0_i32_4, %arg3[%c1] : memref<2xi32, #tpu.memory_space<smem>>
    %c0_5 = arith.constant 0 : index
    %c0_6 = arith.constant 0 : index
    %11 = vector.load %arg2[%c0_5, %c0_6] : memref<8x128xf32, #tpu.memory_space<vmem>>, vector<8x128xf32>
    tpu.vector_store %arg2[%c0_5, %c0_6], %8 {strides = array<i32>} : memref<8x128xf32, #tpu.memory_space<vmem>>, vector<8x128xf32>,
    %c0_i32_7 = arith.constant 0 : i32
    %c50_i32 = arith.constant 50 : i32
    %12 = arith.addi %c0_i32_7, %c50_i32 : i32
    %c1_i32 = arith.constant 1 : i32
    scf.for %arg4 = %c0_i32_7 to %12 step %c1_i32  : i32 {
      %c0_13 = arith.constant 0 : index
      %17 = memref.load %arg3[%c0_13] : memref<2xi32, #tpu.memory_space<smem>>
      %c0_i32_14 = arith.constant 0 : i32
      %18 = arith.cmpi eq, %17, %c0_i32_14 : i32
      %19 = arith.extui %18 : i1 to i32
      %c0_i32_15 = arith.constant 0 : i32
      %20 = arith.cmpi ne, %19, %c0_i32_15 : i32
      scf.if %20 {
        %c1_16 = arith.constant 1 : index
        %21 = memref.load %arg3[%c1_16] : memref<2xi32, #tpu.memory_space<smem>>
        %c0_17 = arith.constant 0 : index
        %22 = memref.load %arg3[%c0_17] : memref<2xi32, #tpu.memory_space<smem>>
        memref.store %21, %arg3[%c0_17] : memref<2xi32, #tpu.memory_space<smem>>
        %c0_18 = arith.constant 0 : index
        %c0_19 = arith.constant 0 : index
        %23 = vector.load %arg2[%c0_18, %c0_19] : memref<8x128xf32, #tpu.memory_space<vmem>>, vector<8x128xf32>
        %c0_i32_20 = arith.constant 0 : i32
        %cst_21 = arith.constant 1.000000e+00 : f32
        %24 = vector.broadcast %cst_21 : f32 to vector<8x128xf32>
        %25 = arith.addf %23, %24 : vector<8x128xf32>
        %26 = math.exp %23 : vector<8x128xf32>
        %27 = arith.mulf %0, %26 : vector<8x128xf32>
        %28 = arith.subf %25, %27 : vector<8x128xf32>
        %c1_i32_22 = arith.constant 1 : i32
        %cst_23 = arith.constant 1.000000e+00 : f32
        %29 = vector.broadcast %cst_23 : f32 to vector<8x128xf32>
        %30 = arith.addf %28, %29 : vector<8x128xf32>
        %31 = math.exp %28 : vector<8x128xf32>
        %32 = arith.mulf %0, %31 : vector<8x128xf32>
        %33 = arith.subf %30, %32 : vector<8x128xf32>
        %c2_i32 = arith.constant 2 : i32
        %cst_24 = arith.constant 1.000000e+00 : f32
        %34 = vector.broadcast %cst_24 : f32 to vector<8x128xf32>
        %35 = arith.addf %33, %34 : vector<8x128xf32>
        %36 = math.exp %33 : vector<8x128xf32>
        %37 = arith.mulf %0, %36 : vector<8x128xf32>
        %38 = arith.subf %35, %37 : vector<8x128xf32>
        %c3_i32 = arith.constant 3 : i32
        %cst_25 = arith.constant 1.000000e+00 : f32
        %39 = vector.broadcast %cst_25 : f32 to vector<8x128xf32>
        %40 = arith.addf %38, %39 : vector<8x128xf32>
        %41 = math.exp %38 : vector<8x128xf32>
        %42 = arith.mulf %0, %41 : vector<8x128xf32>
        %43 = arith.subf %40, %42 : vector<8x128xf32>
        %c4_i32 = arith.constant 4 : i32
        %cst_26 = arith.constant 1.000000e+00 : f32
        %44 = vector.broadcast %cst_26 : f32 to vector<8x128xf32>
        %45 = arith.addf %43, %44 : vector<8x128xf32>
        %46 = math.exp %43 : vector<8x128xf32>
        %47 = arith.mulf %0, %46 : vector<8x128xf32>
        %48 = arith.subf %45, %47 : vector<8x128xf32>
        %c5_i32 = arith.constant 5 : i32
        %cst_27 = arith.constant 1.000000e+00 : f32
        %49 = vector.broadcast %cst_27 : f32 to vector<8x128xf32>
        %50 = arith.addf %48, %49 : vector<8x128xf32>
        %51 = math.exp %48 : vector<8x128xf32>
        %52 = arith.mulf %0, %51 : vector<8x128xf32>
        %53 = arith.subf %50, %52 : vector<8x128xf32>
        %c6_i32 = arith.constant 6 : i32
        %cst_28 = arith.constant 1.000000e+00 : f32
        %54 = vector.broadcast %cst_28 : f32 to vector<8x128xf32>
        %55 = arith.addf %53, %54 : vector<8x128xf32>
        %56 = math.exp %53 : vector<8x128xf32>
        %57 = arith.mulf %0, %56 : vector<8x128xf32>
        %58 = arith.subf %55, %57 : vector<8x128xf32>
        %c7_i32 = arith.constant 7 : i32
        %cst_29 = arith.constant 1.000000e+00 : f32
        %59 = vector.broadcast %cst_29 : f32 to vector<8x128xf32>
        %60 = arith.addf %58, %59 : vector<8x128xf32>
        %61 = math.exp %58 : vector<8x128xf32>
        %62 = arith.mulf %0, %61 : vector<8x128xf32>
        %63 = arith.subf %60, %62 : vector<8x128xf32>
        %64 = arith.subf %63, %23 : vector<8x128xf32>
        %65 = math.absf %64 : vector<8x128xf32>
        %66 = vector.shape_cast %65 : vector<8x128xf32> to vector<1x8x128xf32>
        %cst_30 = arith.constant dense<0xFF800000> : vector<1xf32>
        %67 = vector.multi_reduction <maximumf>, %66, %cst_30 [1, 2] : vector<1x8x128xf32> to vector<1xf32>
        %68 = vector.shape_cast %67 : vector<1xf32> to vector<1x1x1xf32>
        %69 = vector.extract %68[0, 0, 0] : f32 from vector<1x1x1xf32>
        %c0_31 = arith.constant 0 : index
        %c0_32 = arith.constant 0 : index
        %70 = vector.load %arg2[%c0_31, %c0_32] : memref<8x128xf32, #tpu.memory_space<vmem>>, vector<8x128xf32>
        tpu.vector_store %arg2[%c0_31, %c0_32], %63 {strides = array<i32>} : memref<8x128xf32, #tpu.memory_space<vmem>>, vector<8x128xf32>,
        %cst_33 = arith.constant 0.000000e+00 : f32
        %71 = arith.cmpf ole, %69, %cst_33 : f32
        %72 = arith.extui %71 : i1 to i32
        %c1_34 = arith.constant 1 : index
        %73 = memref.load %arg3[%c1_34] : memref<2xi32, #tpu.memory_space<smem>>
        memref.store %72, %arg3[%c1_34] : memref<2xi32, #tpu.memory_space<smem>>
      } else {
      }
    }
    %c0_8 = arith.constant 0 : index
    %c0_9 = arith.constant 0 : index
    %13 = vector.load %arg2[%c0_8, %c0_9] : memref<8x128xf32, #tpu.memory_space<vmem>>, vector<8x128xf32>
    %cst_10 = arith.constant 0.769230782 : f32
    %14 = vector.broadcast %cst_10 : f32 to vector<8x128xf32>
    %15 = arith.mulf %13, %14 : vector<8x128xf32>
    %c0_11 = arith.constant 0 : index
    %c0_12 = arith.constant 0 : index
    %16 = vector.load %arg2[%c0_11, %c0_12] : memref<8x128xf32, #tpu.memory_space<vmem>>, vector<8x128xf32>
    tpu.vector_store %arg2[%c0_11, %c0_12], %15 {strides = array<i32>} : memref<8x128xf32, #tpu.memory_space<vmem>>, vector<8x128xf32>,
    return
  }
  func.func @transform_0(%arg0: i32) -> (i32, i32) {
    %c0_i32 = arith.constant 0 : i32
    %c0_i32_0 = arith.constant 0 : i32
    return %arg0, %c0_i32 : i32, i32
  }
  func.func @transform_1(%arg0: i32) -> (i32, i32) {
    %c0_i32 = arith.constant 0 : i32
    %c0_i32_0 = arith.constant 0 : i32
    return %arg0, %c0_i32 : i32, i32
  }
}

</mosaic_0001>

<llo_original>
// kernel: tpu_custom_call.1
$region0: #{tpu_custom_call.1}
  #allocation0 [shape = 'u32[]', space=smem, size = 0x4, offset = 0x4, fixed_abs, tag = 'smem constant byte address 0x4 - core index']
  #allocation1 [shape = 'u32[144,128]{1,0:T(1,128)}', space=vmem, size = 0x12000, scoped, tag = 'internal scratch']
  #allocation2 [shape = 's32[2]{0:T(128)}', space=smem, size = 0x200, scoped, tag = 'scratch operand']
  %s0 = inlined_call_operand.hbm [shape: f32[16,128], index: 0, kind: input, shape index: {}]
  %s1 = inlined_call_operand.hbm [shape: f32[16,128], index: 1, kind: output, shape index: {}]
  %s2 = sld [smem:[#allocation0]]
  $region52: #{tpu_custom_call.1} parent=0
    _
  %s4 = ssub.s32 1, %s2
  %s5 = scalar_select 0, %s4, %s2
  $region1: #{tpu_custom_call.1} parent=0
    #allocation3 [shape = 'u8[8192]{0}', space=vmem, size = 0x2000, scoped, tag = 'input window, operand 0']
    #allocation4 [shape = 's32[2]{0}', space=sflag, size = 0x8, scoped, tag = 'scoped memory for tpu_custom_call.1']
    #allocation5 [shape = 's32[2]{0}', space=sflag, size = 0x8, scoped, tag = 'scoped memory for tpu_custom_call.1']
    #allocation6 [shape = 'u8[8192]{0}', space=vmem, size = 0x2000, scoped, tag = 'output window, operand 0']
    %6 = vsyncpa [#allocation4], 0
    %s7 = scalar_lea.sflag [#allocation4], 1
    %8 = vsyncpa %s7, 0
    %9 = vsyncpa [#allocation5], 0
    %s10 = scalar_lea.sflag [#allocation5], 1
    %11 = vsyncpa %s10, 0
    loop: start=0, step=1, limit=4
    $region2: #{tpu_custom_call.1} parent=1 // loop_pre_header
      _
    $region3: #{tpu_custom_call.1} parent=1 // loop_header
      %s13 = sphi 0, %s17
      %p14 = scmp.ge.s32.totalorder %s13, 4
      %s23 = sphi 0, %s25
      %s26 = sphi 0, %s23
      %s27 = sphi 0, %s26
      %s43 = sphi 0, %s27
      %s49 = sphi 0, %s51
      %s52 = sphi 0, %s49
      %s53 = sphi 0, %s52
      %s69 = sphi 0, %s53
    $region4: #{tpu_custom_call.1} parent=1 // loop_header_branch
      %16 = sbr.rel (%p14) target = $region8
    $region5: #{tpu_custom_call.1} parent=1 // loop_body
      %s18 = ssub.s32 %s13, 1
      %s19 = ssub.s32 %s13, 2
      %s20 = sadd.s32 %s13, 1
      %s21 = ssub.s32 %s13, %s20
      %p22 = scmp.eq.s32.totalorder %s21, 0
      %s24 = sadd.s32 %s23, 1
      %s25 = scalar_select %p22, %s23, %s24
      %p28 = pneg %p22
      %p29 = scmp.eq.s32.totalorder %s13, 1
      %p30 = por %p28, %p29
      %p31 = scmp.ne.s32.totalorder %s23, %s26
      %p32 = scmp.eq.s32.totalorder %s13, 0
      %p33 = por %p31, %p32
      %p34 = scmp.ne.s32.totalorder %s23, %s26
      %p35 = scmp.eq.s32.totalorder %s18, 1
      %p36 = por %p34, %p35
      %p37 = scmp.ne.s32.totalorder %s26, %s27
      %p38 = scmp.eq.s32.totalorder %s18, 0
      %p39 = por %p37, %p38
      %p40 = scmp.ne.s32.totalorder %s26, %s27
      %p41 = scmp.eq.s32.totalorder %s19, 1
      %p42 = por %p40, %p41
      %p44 = scmp.ne.s32.totalorder %s27, %s43
      %p45 = scmp.eq.s32.totalorder %s19, 0
      %p46 = por %p44, %p45
      %s47 = ssub.s32 %s13, %s20
      %p48 = scmp.eq.s32.totalorder %s47, 0
      %s50 = sadd.s32 %s49, 1
      %s51 = scalar_select %p48, %s49, %s50
      %p54 = pneg %p48
      %p55 = scmp.eq.s32.totalorder %s13, 1
      %p56 = por %p54, %p55
      %p57 = scmp.ne.s32.totalorder %s49, %s52
      %p58 = scmp.eq.s32.totalorder %s13, 0
      %p59 = por %p57, %p58
      %p60 = scmp.ne.s32.totalorder %s49, %s52
      %p61 = scmp.eq.s32.totalorder %s18, 1
      %p62 = por %p60, %p61
      %p63 = scmp.ne.s32.totalorder %s52, %s53
      %p64 = scmp.eq.s32.totalorder %s18, 0
      %p65 = por %p63, %p64
      %p66 = scmp.ne.s32.totalorder %s52, %s53
      %p67 = scmp.eq.s32.totalorder %s19, 1
      %p68 = por %p66, %p67
      %p70 = scmp.ne.s32.totalorder %s53, %s69
      %p71 = scmp.eq.s32.totalorder %s19, 0
      %p72 = por %p70, %p71
      %p73 = scmp.le.s32.totalorder 1, %s13
      %p74 = scmp.lt.s32.totalorder %s13, 3
      %p75 = pnand %p73, %p74
      %p76 = pneg %p75
      // Predicated region
      $region9: #{tpu_custom_call.1} parent=5 // pred_check
        _
      $region10: #{tpu_custom_call.1} parent=5 // pred_check_branch
        %78 = sbr.rel (%p75) target = $region12
      $region11: #{tpu_custom_call.1} parent=5 // pred_region
        %s79 = ssub.s32 %s13, 1
      $region12: #{tpu_custom_call.1} parent=5 // pred_fallthru
        _
      %p80 = scmp.lt.s32.totalorder %s13, 2
      // Predicated region
      $region13: #{tpu_custom_call.1} parent=5 // pred_check
        %p81 = pneg %p80
      $region14: #{tpu_custom_call.1} parent=5 // pred_check_branch
        %83 = sbr.rel (%p81) target = $region16
      $region15: #{tpu_custom_call.1} parent=5 // pred_region
        // Predicated region
        $region17: #{tpu_custom_call.1} parent=15 // pred_check
          %p84 = pneg %p33
        $region18: #{tpu_custom_call.1} parent=15 // pred_check_branch
          %86 = sbr.rel (%p84) target = $region20
        $region19: #{tpu_custom_call.1} parent=15 // pred_region
          %s87 = sand.u32 %s23, 1
          %s88 = scalar_lea.sflag [#allocation4], %s87
          %s89 = sand.u32 %s23, 1
          %s90 = smul.addr %s89, 8
          %s91 = scalar_lea.vmem [#allocation3], %s90
          %s93 = ssub.s32 128, 128
          %94 = vsyncadd %s88, %s93
          %s95 = smul.addr %s13, 128
          %s96 = scalar_lea.hbm %s0, %s95
          %s98 = sshll.u32 %s91, 4
          %s99 = int_to_ptr.vmem [resolvable:$true] %s98
          %101 = dma.hbm_to_vmem [thread:$0]  %s96, 128, %s99, %s88
        $region20: #{tpu_custom_call.1} parent=15 // pred_fallthru
          _
      $region16: #{tpu_custom_call.1} parent=5 // pred_fallthru
        _
      %p102 = scmp.le.s32.totalorder 1, %s13
      %p103 = scmp.lt.s32.totalorder %s13, 3
      %p104 = pnand %p102, %p103
      %p105 = pneg %p104
      // Predicated region
      $region21: #{tpu_custom_call.1} parent=5 // pred_check
        _
      $region22: #{tpu_custom_call.1} parent=5 // pred_check_branch
        %107 = sbr.rel (%p104) target = $region24
      $region23: #{tpu_custom_call.1} parent=5 // pred_region
        %s108 = ssub.s32 %s13, 1
        %s109 = sand.u32 %s26, 1
        %s110 = scalar_lea.sflag [#allocation4], %s109
        %s111 = sand.u32 %s26, 1
        %s112 = smul.addr %s111, 8
        %s113 = scalar_lea.vmem [#allocation3], %s112
        // Predicated region
        $region25: #{tpu_custom_call.1} parent=23 // pred_check
          %p114 = pneg %p39
        $region26: #{tpu_custom_call.1} parent=23 // pred_check_branch
          %116 = sbr.rel (%p114) target = $region28
        $region27: #{tpu_custom_call.1} parent=23 // pred_region
          %117 = dma.done %s110, 128
        $region28: #{tpu_custom_call.1} parent=23 // pred_fallthru
          _
        %s118 = sand.u32 %s26, 1
        %s119 = scalar_lea.sflag [#allocation4], %s118
        %s120 = sand.u32 %s26, 1
        %s121 = smul.addr %s120, 8
        %s122 = scalar_lea.vmem [#allocation3], %s121
        %p123 = pneg %p39
        %p124 = pneg %p36
        %p125 = pneg %p65
        %p126 = pneg %p62
        %s127 = sand.u32 %s52, 1
        %s128 = scalar_lea.sflag [#allocation5], %s127
        %s129 = sand.u32 %s52, 1
        %s130 = smul.addr %s129, 8
        %s131 = scalar_lea.vmem [#allocation6], %s130
        %v132 = vld [vmem:[%s113] sm:$0xff]
        %v134 = vcvt.s32.f32 %v132
        %v135 = vmul.f32 %v134, 1.1920929e-07
        %v136 = vsub.f32 126.942696, %v135
        %v137 = vmul.f32 %v136, 0.6931472
        %s138 = scalar_lea.smem [#allocation2], 0
        %139 = sst [smem:[%s138]] 0
        %s140 = scalar_lea.smem [#allocation2], 1
        %141 = sst [smem:[%s140]] 0
        %142 = vst [vmem:[%s131] sm:$0xff] %v137
        loop: start=0, step=1, limit=50
        $region29: #{tpu_custom_call.1} parent=23 // loop_pre_header
          _
        $region30: #{tpu_custom_call.1} parent=23 // loop_header
          %s144 = sphi 0, %s148
          %p145 = scmp.ge.s32.totalorder %s144, 50
        $region31: #{tpu_custom_call.1} parent=23 // loop_header_branch
          %147 = sbr.rel (%p145) target = $region35
        $region32: #{tpu_custom_call.1} parent=23 // loop_body
          %s149 = sld [smem:[#allocation2]]
          %p150 = scmp.eq.s32.totalorder %s149, 0
          // Predicated region
          $region36: #{tpu_custom_call.1} parent=32 // pred_check
            %p151 = pneg %p150
          $region37: #{tpu_custom_call.1} parent=32 // pred_check_branch
            %153 = sbr.rel (%p151) target = $region39
          $region38: #{tpu_custom_call.1} parent=32 // pred_region
            %s154 = sld [smem:[#allocation2 + $0x1]]
            %155 = sst [smem:[%s138]] %s154
            %v156 = vld [vmem:[%s131] sm:$0xff]
            %v157 = vadd.f32 %v156, 1.0
            %v158 = vmul.f32 %v156, 1.442695
            %v159 = vpow.pop %v158
            %v160 = vmul.f32 %v132, %v159
            %v161 = vsub.f32 %v157, %v160
            %v162 = vadd.f32 %v161, 1.0
            %v163 = vmul.f32 %v161, 1.442695
            %v164 = vpow.pop %v163
            %v165 = vmul.f32 %v132, %v164
            %v166 = vsub.f32 %v162, %v165
            %v167 = vadd.f32 %v166, 1.0
            %v168 = vmul.f32 %v166, 1.442695
            %v169 = vpow.pop %v168
            %v170 = vmul.f32 %v132, %v169
            %v171 = vsub.f32 %v167, %v170
            %v172 = vadd.f32 %v171, 1.0
            %v173 = vmul.f32 %v171, 1.442695
            %v174 = vpow.pop %v173
            %v175 = vmul.f32 %v132, %v174
            %v176 = vsub.f32 %v172, %v175
            %v177 = vadd.f32 %v176, 1.0
            %v178 = vmul.f32 %v176, 1.442695
            %v179 = vpow.pop %v178
            %v180 = vmul.f32 %v132, %v179
            %v181 = vsub.f32 %v177, %v180
            %v182 = vadd.f32 %v181, 1.0
            %v183 = vmul.f32 %v181, 1.442695
            %v184 = vpow.pop %v183
            %v185 = vmul.f32 %v132, %v184
            %v186 = vsub.f32 %v182, %v185
            %v187 = vadd.f32 %v186, 1.0
            %v188 = vmul.f32 %v186, 1.442695
            %v189 = vpow.pop %v188
            %v190 = vmul.f32 %v132, %v189
            %v191 = vsub.f32 %v187, %v190
            %v192 = vadd.f32 %v191, 1.0
            %v193 = vmul.f32 %v191, 1.442695
            %v194 = vpow.pop %v193
            %v195 = vmul.f32 %v132, %v194
            %v196 = vsub.f32 %v192, %v195
            %v197 = vsub.f32 %v196, %v156
            %v198 = vand.u32 2147483647, %v197
            %199 = vmax.xlane.f32.xlu0 %v198
            %v200 = vpop.xlane.xlu0 %199
            %v201 = vrot.slane %v200, 4
            %v202 = vmax.f32 %v200, %v201
            %v203 = vrot.slane %v202, 2
            %v204 = vmax.f32 %v202, %v203
            %v205 = vrot.slane %v204, 1
            %v206 = vmax.f32 %v204, %v205
            %s207 = vtos %v206
            %208 = vst [vmem:[%s131] sm:$0xff] %v196
            %p209 = scmp.le.f32.partialorder %s207, 0.0
            %s210 = scalar_select %p209, 1, 0
            %211 = sst [smem:[%s140]] %s210
          $region39: #{tpu_custom_call.1} parent=32 // pred_fallthru
            _
        $region33: #{tpu_custom_call.1} parent=23 // loop_footer
          %s148 = sadd.s32 1, %s144
        $region34: #{tpu_custom_call.1} parent=23 // loop_footer_branch
          %143 = sbr.rel target = $region30
        $region35: #{tpu_custom_call.1} parent=23 // loop_exit
          _
        %v212 = vld [vmem:[%s131] sm:$0xff]
        %v213 = vmul.f32 %v212, 0.7692308
        %214 = vst [vmem:[%s131] sm:$0xff] %v213
        %s215 = sand.u32 %s52, 1
        %s216 = scalar_lea.sflag [#allocation5], %s215
        %s217 = sand.u32 %s52, 1
        %s218 = smul.addr %s217, 8
        %s219 = scalar_lea.vmem [#allocation6], %s218
        // Predicated region
        $region40: #{tpu_custom_call.1} parent=23 // pred_check
          %p220 = pneg %p62
        $region41: #{tpu_custom_call.1} parent=23 // pred_check_branch
          %222 = sbr.rel (%p220) target = $region43
        $region42: #{tpu_custom_call.1} parent=23 // pred_region
          %s224 = ssub.s32 128, 128
          %225 = vsyncadd %s216, %s224
          %s226 = smul.addr %s18, 128
          %s227 = scalar_lea.hbm %s1, %s226
          %s229 = sshll.u32 %s219, 4
          %s230 = int_to_ptr.vmem [resolvable:$true] %s229
          %232 = dma.vmem_to_hbm [thread:$0]  %s230, 128, %s227, %s216
        $region43: #{tpu_custom_call.1} parent=23 // pred_fallthru
          _
      $region24: #{tpu_custom_call.1} parent=5 // pred_fallthru
        _
      %p233 = scmp.le.s32.totalorder 2, %s13
      // Predicated region
      $region44: #{tpu_custom_call.1} parent=5 // pred_check
        %p234 = pneg %p233
      $region45: #{tpu_custom_call.1} parent=5 // pred_check_branch
        %236 = sbr.rel (%p234) target = $region47
      $region46: #{tpu_custom_call.1} parent=5 // pred_region
        %s237 = ssub.s32 %s13, 2
        // Predicated region
        $region48: #{tpu_custom_call.1} parent=46 // pred_check
          %p238 = pneg %p68
        $region49: #{tpu_custom_call.1} parent=46 // pred_check_branch
          %240 = sbr.rel (%p238) target = $region51
        $region50: #{tpu_custom_call.1} parent=46 // pred_region
          %s241 = sand.u32 %s53, 1
          %s242 = scalar_lea.sflag [#allocation5], %s241
          %s243 = sand.u32 %s53, 1
          %s244 = smul.addr %s243, 8
          %s245 = scalar_lea.vmem [#allocation6], %s244
          %246 = dma.done %s242, 128
        $region51: #{tpu_custom_call.1} parent=46 // pred_fallthru
          _
      $region47: #{tpu_custom_call.1} parent=5 // pred_fallthru
        _
    $region6: #{tpu_custom_call.1} parent=1 // loop_footer
      %s17 = sadd.s32 1, %s13
    $region7: #{tpu_custom_call.1} parent=1 // loop_footer_branch
      %12 = sbr.rel target = $region3
    $region8: #{tpu_custom_call.1} parent=1 // loop_exit
      _
    %247 = vsyncpa [#allocation4], 1
    %s248 = scalar_lea.sflag [#allocation4], 1
    %249 = vsyncpa %s248, 1
    %250 = vsyncpa [#allocation5], 1
    %s251 = scalar_lea.sflag [#allocation5], 1
    %252 = vsyncpa %s251, 1

</llo_original>
